<compile_context>
chip_gen: v7x
topology: tpu7x:2x2x1
jax: 0.10.0
libtpu: 0.0.40
codegen_flags: <defaults>
</compile_context>

<pallas_src>
import math
import functools

import jax
import jax.numpy as jnp
from jax.experimental import pallas as pl
from jax.experimental.pallas import tpu as pltpu

LN_EPS = 1e-5                   # PyTorch nn.LayerNorm default
NEG_INF = -1e30                 # finite causal-mask fill (avoids exp/-inf NaN)
VMEM_LIMIT = 32 * 1024 * 1024   # explicit scoped-VMEM budget; safe on v5e/v6e/v7x


# ----------------------------- shared math helpers ---------------------------
def _layernorm(x, w, b):
    mu = jnp.mean(x, axis=-1, keepdims=True)
    var = jnp.mean(jnp.square(x - mu), axis=-1, keepdims=True)
    return (x - mu) * jax.lax.rsqrt(var + LN_EPS) * w + b


def _gelu_tanh(x):
    # GELU(approximate='tanh')
    c = math.sqrt(2.0 / math.pi)
    return 0.5 * x * (1.0 + jnp.tanh(c * (x + 0.044715 * x * x * x)))


def _pick_tile(dim, target, unit=128):
    """Largest 128-aligned tile <= target that divides dim (or dim itself)."""
    if dim <= target:
        return dim
    t = (target // unit) * unit
    while t >= unit:
        if dim % t == 0:
            return t
        t -= unit
    # TODO(synk): pad/mask instead of falling back to a whole-axis tile for
    # production shapes that have no 128-aligned divisor (e.g. vocab=50257).
    return dim


# ----------------------------- tiled matmul kernel ---------------------------
def _matmul_kernel(x_ref, w_ref, *rest, activation, has_bias, has_residual):
    # rest layout: [b_ref?][r_ref?] o_ref acc_ref
    n_extra = int(has_bias) + int(has_residual)
    o_ref = rest[n_extra]
    acc_ref = rest[n_extra + 1]
    b_ref = rest[0] if has_bias else None
    if has_residual:
        r_ref = rest[1] if has_bias else rest[0]
    else:
        r_ref = None

    k = pl.program_id(2)

    @pl.when(k == 0)
    def _init():
        acc_ref[...] = jnp.zeros_like(acc_ref)

    acc_ref[...] += jnp.dot(x_ref[...].astype(jnp.bfloat16), w_ref[...],
                            preferred_element_type=jnp.float32)

    @pl.when(k == pl.num_programs(2) - 1)
    def _finalize():
        y = acc_ref[...]
        if has_bias:
            y = y + b_ref[...]
        if activation == "gelu":
            y = _gelu_tanh(y)
        if has_residual:
            y = y + r_ref[...]
        o_ref[...] = y.astype(o_ref.dtype)


def linear(x, w, b=None, *, residual=None, activation=None,
           out_dtype=jnp.float32, tm=256, tn=256, tk=512):
    """y = x @ W [+ b] [gelu] [+ residual], tiled over (M, N, K), f32 accum."""
    M, K = x.shape
    Kw, N = w.shape
    assert K == Kw
    tm = _pick_tile(M, tm)
    tn = _pick_tile(N, tn)
    tk = _pick_tile(K, tk)
    grid = (M // tm, N // tn, K // tk)

    in_specs = [pl.BlockSpec((tm, tk), lambda i, j, k: (i, k)),
                pl.BlockSpec((tk, tn), lambda i, j, k: (k, j))]
    args = [x, w]
    if b is not None:
        in_specs.append(pl.BlockSpec((1, tn), lambda i, j, k: (0, j)))
        args.append(b)
    if residual is not None:
        in_specs.append(pl.BlockSpec((tm, tn), lambda i, j, k: (i, j)))
        args.append(residual)

    kernel = functools.partial(_matmul_kernel, activation=activation,
                               has_bias=b is not None,
                               has_residual=residual is not None)

    return pl.pallas_call(
        kernel,
        out_shape=jax.ShapeDtypeStruct((M, N), out_dtype),
        grid_spec=pltpu.PrefetchScalarGridSpec(
            num_scalar_prefetch=0, grid=grid,
            in_specs=in_specs,
            out_specs=pl.BlockSpec((tm, tn), lambda i, j, k: (i, j)),
            scratch_shapes=[pltpu.VMEM((tm, tn), jnp.float32)]),
        compiler_params=pltpu.CompilerParams(
            dimension_semantics=("parallel", "parallel", "arbitrary"),
            vmem_limit_bytes=VMEM_LIMIT),
    )(*args)


# ----------------------------- LayerNorm kernel -------------------------------
def _layernorm_kernel(x_ref, w_ref, b_ref, o_ref):
    o_ref[...] = _layernorm(x_ref[...], w_ref[...], b_ref[...]).astype(o_ref.dtype)


def layernorm(x, w, b, *, out_dtype=jnp.bfloat16, block_rows=256):
    M, C = x.shape
    tm = _pick_tile(M, block_rows)
    return pl.pallas_call(
        _layernorm_kernel,
        out_shape=jax.ShapeDtypeStruct((M, C), out_dtype),
        grid_spec=pltpu.PrefetchScalarGridSpec(
            num_scalar_prefetch=0, grid=(M // tm,),
            in_specs=[pl.BlockSpec((tm, C), lambda i: (i, 0)),
                      pl.BlockSpec((1, C), lambda i: (0, 0)),
                      pl.BlockSpec((1, C), lambda i: (0, 0))],
            out_specs=pl.BlockSpec((tm, C), lambda i: (i, 0))),
        compiler_params=pltpu.CompilerParams(
            dimension_semantics=("parallel",),
            vmem_limit_bytes=VMEM_LIMIT),
    )(x, w, b)


# ----------------------------- flash attention kernel -------------------------
def _flash_attn_kernel(q_ref, k_ref, v_ref, o_ref, m_sc, l_sc, acc_sc):
    _, tq, hd = q_ref.shape
    _, tk, _ = k_ref.shape
    scale = 1.0 / math.sqrt(hd)
    qi = pl.program_id(1)
    ki = pl.program_id(2)
    q_start = qi * tq
    k_start = ki * tk

    @pl.when(ki == 0)
    def _init():
        m_sc[...] = jnp.full_like(m_sc, -jnp.inf)
        l_sc[...] = jnp.zeros_like(l_sc)
        acc_sc[...] = jnp.zeros_like(acc_sc)

    # Skip compute for KV tiles that are entirely above the causal diagonal
    # (their DMA is also skipped via the clamped BlockSpec index maps).
    @pl.when(k_start <= q_start + (tq - 1))
    def _compute():
        # fold 1/sqrt(hd) into the small (tq, hd) q tile (f32 mul, then bf16)
        q = (q_ref[0].astype(jnp.float32) * scale).astype(jnp.bfloat16)
        k = k_ref[0].astype(jnp.bfloat16)            # (tk, hd)
        v = v_ref[0].astype(jnp.bfloat16)            # (tk, hd)
        s = jax.lax.dot_general(q, k, (((1,), (1,)), ((), ())),
                                preferred_element_type=jnp.float32)
        row = q_start + jax.lax.broadcasted_iota(jnp.int32, (tq, tk), 0)
        col = k_start + jax.lax.broadcasted_iota(jnp.int32, (tq, tk), 1)
        s = jnp.where(row >= col, s, NEG_INF)        # finite fill -> no NaN
        m_new = jnp.maximum(m_sc[...], jnp.max(s, axis=-1, keepdims=True))
        alpha = jnp.exp(m_sc[...] - m_new)
        p = jnp.exp(s - m_new)
        l_sc[...] = alpha * l_sc[...] + jnp.sum(p, axis=-1, keepdims=True)
        acc_sc[...] = alpha * acc_sc[...] + jnp.dot(
            p.astype(jnp.bfloat16), v, preferred_element_type=jnp.float32)
        m_sc[...] = m_new

    @pl.when(ki == pl.num_programs(2) - 1)
    def _finalize():
        o_ref[0] = (acc_sc[...] * pl.reciprocal(l_sc[...], approx=True)
                    ).astype(o_ref.dtype)


def flash_attention(q, k, v, *, block_q=256, block_k=256):
    """Causal attention on head-major (B*n_head, T, head_dim) inputs."""
    BH, T, hd = q.shape
    tq = min(block_q, T)
    tk = min(block_k, T)
    assert T % tq == 0 and T % tk == 0
    grid = (BH, T // tq, T // tk)

    def q_map(b, qi, ki):
        return (b, qi, 0)

    def kv_map(b, qi, ki):
        # Clamp to the last causally-relevant KV tile for this q tile so the
        # fully-masked iterations re-reference the resident block (no DMA).
        last = (qi * tq + (tq - 1)) // tk
        return (b, jnp.minimum(ki, last), 0)

    return pl.pallas_call(
        _flash_attn_kernel,
        out_shape=jax.ShapeDtypeStruct((BH, T, hd), jnp.bfloat16),
        grid_spec=pltpu.PrefetchScalarGridSpec(
            num_scalar_prefetch=0, grid=grid,
            in_specs=[pl.BlockSpec((1, tq, hd), q_map),
                      pl.BlockSpec((1, tk, hd), kv_map),
                      pl.BlockSpec((1, tk, hd), kv_map)],
            out_specs=pl.BlockSpec((1, tq, hd), q_map),
            scratch_shapes=[pltpu.VMEM((tq, 1), jnp.float32),
                            pltpu.VMEM((tq, 1), jnp.float32),
                            pltpu.VMEM((tq, hd), jnp.float32)]),
        compiler_params=pltpu.CompilerParams(
            dimension_semantics=("parallel", "parallel", "arbitrary"),
            vmem_limit_bytes=VMEM_LIMIT),
    )(q, k, v)


# ----------------------------- decoder block / model --------------------------
def decoder_block(x, p, B, T, n_head, *, attn_block=256):
    M, C = x.shape
    hd = C // n_head

    def to_heads(a):  # (B*T, C) -> (B*n_head, T, hd): XLA layout plumbing
        return a.reshape(B, T, n_head, hd).transpose(0, 2, 1, 3).reshape(B * n_head, T, hd)

    # ---- attention branch: x + W_o(Attn(LN1(x))) ----
    h = layernorm(x, p["ln1_w"], p["ln1_b"])                        # bf16 (M, C)
    qkv = linear(h, p["qkv_w"], p["qkv_b"], out_dtype=jnp.bfloat16)  # bf16 (M, 3C)
    q = to_heads(qkv[:, :C])
    k = to_heads(qkv[:, C:2 * C])
    v = to_heads(qkv[:, 2 * C:])
    y = flash_attention(q, k, v, block_q=attn_block, block_k=attn_block)
    y = y.reshape(B, n_head, T, hd).transpose(0, 2, 1, 3).reshape(M, C)
    x = linear(y, p["fc_w"], p["fc_b"], residual=x)                 # f32 (M, C)

    # ---- MLP branch: x + MLP(LN2(x)) ----
    h = layernorm(x, p["ln2_w"], p["ln2_b"])                        # bf16 (M, C)
    h = linear(h, p["fc1_w"], p["fc1_b"], activation="gelu",
               out_dtype=jnp.bfloat16)                              # bf16 (M, H)
    x = linear(h, p["fc2_w"], p["fc2_b"], residual=x)               # f32 (M, C)
    return x


def llama3_forward(idx, params, n_head, *, attn_block=256):
    B, T = idx.shape
    C = params["emb"].shape[1]
    # Embedding lookups are gathers — glue, done in plain JAX.
    tok = jnp.take(params["emb"], idx, axis=0)                      # (B, T, C)
    pos = params["pos_emb"][:T]                                     # (T, C)
    x = (tok + pos[None]).reshape(B * T, C)                         # f32 residual stream
    for p in params["layers"]:
        x = decoder_block(x, p, B, T, n_head, attn_block=attn_block)
    h = layernorm(x, params["ln_f_w"], params["ln_f_b"])            # bf16
    # lm_head: bias=False in the model; large M tile so each vocab weight tile
    # streams from HBM ~once.
    logits = linear(h, params["lm_head_w"], None, tm=1024, tn=256, tk=512)
    return logits.reshape(B, T, -1)


# ----------------------------- pure-JAX reference ------------------------------
def reference_forward(idx, params, n_head):
    """Mirrors the kernels' bf16-operand / f32-accumulation mixed precision."""
    B, T = idx.shape
    C = params["emb"].shape[1]
    hd = C // n_head
    scale = 1.0 / math.sqrt(hd)

    def mm(h, w, b=None):
        y = jnp.dot(h.astype(jnp.bfloat16), w, preferred_element_type=jnp.float32)
        return y if b is None else y + b

    x = (jnp.take(params["emb"], idx, axis=0) + params["pos_emb"][:T][None]
         ).reshape(B * T, C)
    for p in params["layers"]:
        h = _layernorm(x, p["ln1_w"], p["ln1_b"])
        qkv = mm(h, p["qkv_w"], p["qkv_b"])
        q, k, v = qkv[:, :C], qkv[:, C:2 * C], qkv[:, 2 * C:]

        def heads(a):
            return a.reshape(B, T, n_head, hd).transpose(0, 2, 1, 3)

        qh, kh, vh = heads(q), heads(k), heads(v)
        s = jnp.einsum("bhqd,bhkd->bhqk", qh.astype(jnp.bfloat16),
                       kh.astype(jnp.bfloat16),
                       preferred_element_type=jnp.float32) * scale
        mask = jnp.tril(jnp.ones((T, T), bool))
        s = jnp.where(mask, s, NEG_INF)
        a = jax.nn.softmax(s, axis=-1)
        y = jnp.einsum("bhqk,bhkd->bhqd", a.astype(jnp.bfloat16),
                       vh.astype(jnp.bfloat16),
                       preferred_element_type=jnp.float32)
        y = y.transpose(0, 2, 1, 3).reshape(B * T, C)
        x = x + mm(y, p["fc_w"], p["fc_b"])
        h = _layernorm(x, p["ln2_w"], p["ln2_b"])
        h = _gelu_tanh(mm(h, p["fc1_w"], p["fc1_b"]))
        x = x + mm(h, p["fc2_w"], p["fc2_b"])
    h = _layernorm(x, params["ln_f_w"], params["ln_f_b"])
    return mm(h, params["lm_head_w"]).reshape(B, T, -1)


# ----------------------------- deterministic init ------------------------------
def init_params(key, n_vocab, max_seq_len, n_embd, n_head, n_layer, mlp_ratio):
    C, H = n_embd, int(n_embd * mlp_ratio)
    keys = iter(jax.random.split(key, 3 + 4 * n_layer))

    def lin(k, fan_in, fan_out):
        # bf16 weight storage: MXU-native operands, halves HBM/VMEM bytes.
        return (jax.random.normal(k, (fan_in, fan_out), jnp.float32) * 0.02
                ).astype(jnp.bfloat16)

    params = {
        "emb": jax.random.normal(next(keys), (n_vocab, C), jnp.float32) * 0.02,
        "pos_emb": jax.random.normal(next(keys), (max_seq_len, C), jnp.float32) * 0.02,
        "ln_f_w": jnp.ones((1, C), jnp.float32),
        "ln_f_b": jnp.zeros((1, C), jnp.float32),
        "lm_head_w": lin(next(keys), C, n_vocab),   # lm_head has bias=False
        "layers": [],
    }
    # TODO(synk): reference code ties emb.weight to a nonexistent self.ln.weight; left untied.
    for _ in range(n_layer):
        kqkv, ko, k1, k2 = (next(keys) for _ in range(4))
        params["layers"].append({
            "ln1_w": jnp.ones((1, C), jnp.float32),
            "ln1_b": jnp.zeros((1, C), jnp.float32),
            # fused qkv Linear: single (C, 3C) projection, same math as nn.Linear(C, 3C).
            "qkv_w": lin(kqkv, C, 3 * C),
            "qkv_b": jnp.zeros((1, 3 * C), jnp.float32),
            "fc_w": lin(ko, C, C), "fc_b": jnp.zeros((1, C), jnp.float32),
            "ln2_w": jnp.ones((1, C), jnp.float32),
            "ln2_b": jnp.zeros((1, C), jnp.float32),
            "fc1_w": lin(k1, C, H), "fc1_b": jnp.zeros((1, H), jnp.float32),
            "fc2_w": lin(k2, H, C), "fc2_b": jnp.zeros((1, C), jnp.float32),
        })
    return params


if __name__ == "__main__":
    # Small LLaMAConfig-consistent shapes, kept 128-lane friendly.
    n_embd, n_head, n_layer = 128, 4, 2          # head_dim = 32
    n_vocab, max_seq_len, mlp_ratio = 256, 64, 4
    B, T = 2, 64

    key = jax.random.PRNGKey(0)
    kp, kd = jax.random.split(key)
    params = init_params(kp, n_vocab, max_seq_len, n_embd, n_head, n_layer, mlp_ratio)
    idx = jax.random.randint(kd, (B, T), 0, n_vocab, dtype=jnp.int32)

    # attn_block=32 exercises the multi-tile online-softmax + causal clamp/skip
    # path at toy T=64 (default 256 for real sequence lengths).
    logits = llama3_forward(idx, params, n_head, attn_block=32)
    logits = jax.block_until_ready(logits)
    assert logits.shape == (B, T, n_vocab)

    ref = jax.block_until_ready(reference_forward(idx, params, n_head))
    assert jnp.allclose(logits, ref, atol=2e-2, rtol=2e-2), \
        f"mismatch vs reference, max abs err {jnp.max(jnp.abs(logits - ref))}"

    print("KERNEL_OK")
</pallas_src>

<mosaic_0001>
module attributes {stable_mosaic.version = 11 : i64} {
  func.func @_layernorm_kernel(%arg0: i32, %arg1: memref<128x128xf32, #tpu.memory_space<vmem>>, %arg2: memref<1x128xf32, #tpu.memory_space<vmem>>, %arg3: memref<1x128xf32, #tpu.memory_space<vmem>>, %arg4: memref<128x128xbf16, #tpu.memory_space<vmem>>) attributes {dimension_semantics = [#tpu.dimension_semantics<parallel>], iteration_bounds = array<i64: 1>, scalar_prefetch = 0 : i64, scratch_operands = 0 : i64, tpu.core_type = #tpu.core_type<tc>, window_params = [{transform_indices = @transform_0, window_bounds = array<i64: 128, 128>}, {pipeline_mode = #tpu.pipeline_mode<synchronous>, transform_indices = @transform_1, window_bounds = array<i64: 1, 128>}, {pipeline_mode = #tpu.pipeline_mode<synchronous>, transform_indices = @transform_2, window_bounds = array<i64: 1, 128>}, {transform_indices = @transform_3, window_bounds = array<i64: 128, 128>}]} {
    %c0 = arith.constant 0 : index
    %c0_0 = arith.constant 0 : index
    %0 = vector.load %arg1[%c0, %c0_0] : memref<128x128xf32, #tpu.memory_space<vmem>>, vector<128x128xf32>
    %c0_1 = arith.constant 0 : index
    %c0_2 = arith.constant 0 : index
    %1 = vector.load %arg2[%c0_1, %c0_2] : memref<1x128xf32, #tpu.memory_space<vmem>>, vector<1x128xf32>
    %c0_3 = arith.constant 0 : index
    %c0_4 = arith.constant 0 : index
    %2 = vector.load %arg3[%c0_3, %c0_4] : memref<1x128xf32, #tpu.memory_space<vmem>>, vector<1x128xf32>
    %cst = arith.constant dense<0.000000e+00> : vector<128xf32>
    %3 = vector.multi_reduction <add>, %0, %cst [1] : vector<128x128xf32> to vector<128xf32>
    %4 = vector.shape_cast %3 : vector<128xf32> to vector<128x1xf32>
    %cst_5 = arith.constant 1.280000e+02 : f32
    %5 = vector.broadcast %cst_5 : f32 to vector<128x1xf32>
    %6 = arith.divf %4, %5 : vector<128x1xf32>
    %7 = vector.broadcast %6 : vector<128x1xf32> to vector<128x128xf32>
    %8 = arith.subf %0, %7 : vector<128x128xf32>
    %9 = arith.mulf %8, %8 : vector<128x128xf32>
    %cst_6 = arith.constant dense<0.000000e+00> : vector<128xf32>
    %10 = vector.multi_reduction <add>, %9, %cst_6 [1] : vector<128x128xf32> to vector<128xf32>
    %11 = vector.shape_cast %10 : vector<128xf32> to vector<128x1xf32>
    %cst_7 = arith.constant 1.280000e+02 : f32
    %12 = vector.broadcast %cst_7 : f32 to vector<128x1xf32>
    %13 = arith.divf %11, %12 : vector<128x1xf32>
    %14 = vector.broadcast %6 : vector<128x1xf32> to vector<128x128xf32>
    %15 = arith.subf %0, %14 : vector<128x128xf32>
    %cst_8 = arith.constant 9.99999974E-6 : f32
    %16 = vector.broadcast %cst_8 : f32 to vector<128x1xf32>
    %17 = arith.addf %13, %16 : vector<128x1xf32>
    %18 = math.rsqrt %17 : vector<128x1xf32>
    %19 = vector.broadcast %18 : vector<128x1xf32> to vector<128x128xf32>
    %20 = arith.mulf %15, %19 : vector<128x128xf32>
    %21 = vector.broadcast %1 : vector<1x128xf32> to vector<128x128xf32>
    %22 = arith.mulf %20, %21 : vector<128x128xf32>
    %23 = vector.broadcast %2 : vector<1x128xf32> to vector<128x128xf32>
    %24 = arith.addf %22, %23 : vector<128x128xf32>
    %25 = arith.truncf %24 : vector<128x128xf32> to vector<128x128xbf16>
    %c0_9 = arith.constant 0 : index
    %c0_10 = arith.constant 0 : index
    %26 = vector.load %arg4[%c0_9, %c0_10] : memref<128x128xbf16, #tpu.memory_space<vmem>>, vector<128x128xbf16>
    tpu.vector_store %arg4[%c0_9, %c0_10], %25 {strides = array<i32>} : memref<128x128xbf16, #tpu.memory_space<vmem>>, vector<128x128xbf16>,
    return
  }
  func.func @transform_0(%arg0: i32) -> (i32, i32) {
    %c0_i32 = arith.constant 0 : i32
    %c0_i32_0 = arith.constant 0 : i32
    return %arg0, %c0_i32 : i32, i32
  }
  func.func @transform_1(%arg0: i32) -> (i32, i32) {
    %c0_i32 = arith.constant 0 : i32
    %c0_i32_0 = arith.constant 0 : i32
    %c0_i32_1 = arith.constant 0 : i32
    return %c0_i32, %c0_i32_0 : i32, i32
  }
  func.func @transform_2(%arg0: i32) -> (i32, i32) {
    %c0_i32 = arith.constant 0 : i32
    %c0_i32_0 = arith.constant 0 : i32
    %c0_i32_1 = arith.constant 0 : i32
    return %c0_i32, %c0_i32_0 : i32, i32
  }
  func.func @transform_3(%arg0: i32) -> (i32, i32) {
    %c0_i32 = arith.constant 0 : i32
    %c0_i32_0 = arith.constant 0 : i32
    return %arg0, %c0_i32 : i32, i32
  }
}

</mosaic_0001>

<llo_original>
// kernel: tpu_custom_call.1
$region0: #{tpu_custom_call.1}
  #allocation0 [shape = 'u32[]', space=smem, size = 0x4, offset = 0x4, fixed_abs, tag = 'smem constant byte address 0x4 - core index']
  #allocation1 [shape = 'u32[144,128]{1,0:T(1,128)}', space=vmem, size = 0x12000, scoped, tag = 'internal scratch']
  %s0 = inlined_call_operand.hbm [shape: f32[128,128], index: 0, kind: input, shape index: {}]
  %s1 = inlined_call_operand.vmem [shape: f32[1,128], index: 1, kind: input, shape index: {}]
  %s2 = inlined_call_operand.vmem [shape: f32[1,128], index: 2, kind: input, shape index: {}]
  %s3 = inlined_call_operand.hbm [shape: bf16[128,128], index: 3, kind: output, shape index: {}]
  %s4 = sld [smem:[#allocation0]]
  $region26: #{tpu_custom_call.1} parent=0
    _
  %s6 = ssub.s32 1, %s4
  %s7 = scalar_select 0, %s6, %s4
  $region1: #{tpu_custom_call.1} parent=0
    #allocation2 [shape = 'u8[65536]{0}', space=vmem, size = 0x10000, scoped, tag = 'input window, operand 0, single buffered']
    #allocation3 [shape = 's32[1]{0}', space=sflag, size = 0x4, scoped, tag = 'scoped memory for tpu_custom_call.1']
    #allocation4 [shape = 's32[1]{0}', space=sflag, size = 0x4, scoped, tag = 'scoped memory for tpu_custom_call.1']
    #allocation5 [shape = 'u8[32768]{0}', space=vmem, size = 0x8000, scoped, tag = 'output window, operand 0, single buffered']
    %8 = vsyncpa [#allocation3], 0
    %9 = vsyncpa [#allocation4], 0
    // Predicated region
    $region2: #{tpu_custom_call.1} parent=1 // pred_check
      _
    $region3: #{tpu_custom_call.1} parent=1 // pred_check_branch
      %11 = sbr.rel (0) target = $region5
    $region4: #{tpu_custom_call.1} parent=1 // pred_region
      %s13 = ssub.s32 2048, 2048
      %14 = vsyncadd [#allocation3], %s13
      %s15 = sshll.u32 [#allocation2], 4
      %s16 = int_to_ptr.vmem [resolvable:$true] %s15
      %21 = dma.hbm_to_vmem [thread:$0]  %s0, 2048, %s16, [#allocation3], 128, 128, 8
    $region5: #{tpu_custom_call.1} parent=1 // pred_fallthru
      _
    // Predicated region
    $region6: #{tpu_custom_call.1} parent=1 // pred_check
      _
    $region7: #{tpu_custom_call.1} parent=1 // pred_check_branch
      %23 = sbr.rel (0) target = $region9
    $region8: #{tpu_custom_call.1} parent=1 // pred_region
      _
    $region9: #{tpu_custom_call.1} parent=1 // pred_fallthru
      _
    // Predicated region
    $region10: #{tpu_custom_call.1} parent=1 // pred_check
      _
    $region11: #{tpu_custom_call.1} parent=1 // pred_check_branch
      %25 = sbr.rel (0) target = $region13
    $region12: #{tpu_custom_call.1} parent=1 // pred_region
      _
    $region13: #{tpu_custom_call.1} parent=1 // pred_fallthru
      _
    // Predicated region
    $region14: #{tpu_custom_call.1} parent=1 // pred_check
      _
    $region15: #{tpu_custom_call.1} parent=1 // pred_check_branch
      %27 = sbr.rel (0) target = $region17
    $region16: #{tpu_custom_call.1} parent=1 // pred_region
      %28 = dma.done [#allocation3], 2048
    $region17: #{tpu_custom_call.1} parent=1 // pred_fallthru
      _
    %v29 = vld [vmem:[#allocation2] sm:$0xff]
    %v30 = vld [vmem:[#allocation2 + $0x8] sm:$0xff]
    %v31 = vld [vmem:[#allocation2 + $0x10] sm:$0xff]
    %v32 = vld [vmem:[#allocation2 + $0x18] sm:$0xff]
    %v33 = vld [vmem:[#allocation2 + $0x20] sm:$0xff]
    %v34 = vld [vmem:[#allocation2 + $0x28] sm:$0xff]
    %v35 = vld [vmem:[#allocation2 + $0x30] sm:$0xff]
    %v36 = vld [vmem:[#allocation2 + $0x38] sm:$0xff]
    %v37 = vld [vmem:[#allocation2 + $0x40] sm:$0xff]
    %v38 = vld [vmem:[#allocation2 + $0x48] sm:$0xff]
    %v39 = vld [vmem:[#allocation2 + $0x50] sm:$0xff]
    %v40 = vld [vmem:[#allocation2 + $0x58] sm:$0xff]
    %v41 = vld [vmem:[#allocation2 + $0x60] sm:$0xff]
    %v42 = vld [vmem:[#allocation2 + $0x68] sm:$0xff]
    %v43 = vld [vmem:[#allocation2 + $0x70] sm:$0xff]
    %v44 = vld [vmem:[#allocation2 + $0x78] sm:$0xff]
    %v45 = vld [vmem:[%s1] sm:$0x1]
    %v46 = vld [vmem:[%s2] sm:$0x1]
    %47 = vadd.xlane.f32.xlu0 %v29
    %v48 = vpop.xlane.xlu0 %47
    %49 = vadd.xlane.f32.xlu0 %v30
    %v50 = vpop.xlane.xlu0 %49
    %51 = vadd.xlane.f32.xlu0 %v31
    %v52 = vpop.xlane.xlu0 %51
    %53 = vadd.xlane.f32.xlu0 %v32
    %v54 = vpop.xlane.xlu0 %53
    %55 = vadd.xlane.f32.xlu0 %v33
    %v56 = vpop.xlane.xlu0 %55
    %57 = vadd.xlane.f32.xlu0 %v34
    %v58 = vpop.xlane.xlu0 %57
    %59 = vadd.xlane.f32.xlu0 %v35
    %v60 = vpop.xlane.xlu0 %59
    %61 = vadd.xlane.f32.xlu0 %v36
    %v62 = vpop.xlane.xlu0 %61
    %63 = vadd.xlane.f32.xlu0 %v37
    %v64 = vpop.xlane.xlu0 %63
    %65 = vadd.xlane.f32.xlu0 %v38
    %v66 = vpop.xlane.xlu0 %65
    %67 = vadd.xlane.f32.xlu0 %v39
    %v68 = vpop.xlane.xlu0 %67
    %69 = vadd.xlane.f32.xlu0 %v40
    %v70 = vpop.xlane.xlu0 %69
    %71 = vadd.xlane.f32.xlu0 %v41
    %v72 = vpop.xlane.xlu0 %71
    %73 = vadd.xlane.f32.xlu0 %v42
    %v74 = vpop.xlane.xlu0 %73
    %75 = vadd.xlane.f32.xlu0 %v43
    %v76 = vpop.xlane.xlu0 %75
    %77 = vadd.xlane.f32.xlu0 %v44
    %v78 = vpop.xlane.xlu0 %77
    %v79 = vrcp.pop 128.0
    %v80 = vmul.f32 %v48, %v79
    %v81 = vmul.f32 %v50, %v79
    %v82 = vmul.f32 %v52, %v79
    %v83 = vmul.f32 %v54, %v79
    %v84 = vmul.f32 %v56, %v79
    %v85 = vmul.f32 %v58, %v79
    %v86 = vmul.f32 %v60, %v79
    %v87 = vmul.f32 %v62, %v79
    %v88 = vmul.f32 %v64, %v79
    %v89 = vmul.f32 %v66, %v79
    %v90 = vmul.f32 %v68, %v79
    %v91 = vmul.f32 %v70, %v79
    %v92 = vmul.f32 %v72, %v79
    %v93 = vmul.f32 %v74, %v79
    %v94 = vmul.f32 %v76, %v79
    %v95 = vmul.f32 %v78, %v79
    %v96 = vsub.f32 %v29, %v80
    %v97 = vsub.f32 %v30, %v81
    %v98 = vsub.f32 %v31, %v82
    %v99 = vsub.f32 %v32, %v83
    %v100 = vsub.f32 %v33, %v84
    %v101 = vsub.f32 %v34, %v85
    %v102 = vsub.f32 %v35, %v86
    %v103 = vsub.f32 %v36, %v87
    %v104 = vsub.f32 %v37, %v88
    %v105 = vsub.f32 %v38, %v89
    %v106 = vsub.f32 %v39, %v90
    %v107 = vsub.f32 %v40, %v91
    %v108 = vsub.f32 %v41, %v92
    %v109 = vsub.f32 %v42, %v93
    %v110 = vsub.f32 %v43, %v94
    %v111 = vsub.f32 %v44, %v95
    %v112 = vmul.f32 %v96, %v96
    %v113 = vmul.f32 %v97, %v97
    %v114 = vmul.f32 %v98, %v98
    %v115 = vmul.f32 %v99, %v99
    %v116 = vmul.f32 %v100, %v100
    %v117 = vmul.f32 %v101, %v101
    %v118 = vmul.f32 %v102, %v102
    %v119 = vmul.f32 %v103, %v103
    %v120 = vmul.f32 %v104, %v104
    %v121 = vmul.f32 %v105, %v105
    %v122 = vmul.f32 %v106, %v106
    %v123 = vmul.f32 %v107, %v107
    %v124 = vmul.f32 %v108, %v108
    %v125 = vmul.f32 %v109, %v109
    %v126 = vmul.f32 %v110, %v110
    %v127 = vmul.f32 %v111, %v111
    %128 = vadd.xlane.f32.xlu0 %v112
    %v129 = vpop.xlane.xlu0 %128
    %130 = vadd.xlane.f32.xlu0 %v113
    %v131 = vpop.xlane.xlu0 %130
    %132 = vadd.xlane.f32.xlu0 %v114
    %v133 = vpop.xlane.xlu0 %132
    %134 = vadd.xlane.f32.xlu0 %v115
    %v135 = vpop.xlane.xlu0 %134
    %136 = vadd.xlane.f32.xlu0 %v116
    %v137 = vpop.xlane.xlu0 %136
    %138 = vadd.xlane.f32.xlu0 %v117
    %v139 = vpop.xlane.xlu0 %138
    %140 = vadd.xlane.f32.xlu0 %v118
    %v141 = vpop.xlane.xlu0 %140
    %142 = vadd.xlane.f32.xlu0 %v119
    %v143 = vpop.xlane.xlu0 %142
    %144 = vadd.xlane.f32.xlu0 %v120
    %v145 = vpop.xlane.xlu0 %144
    %146 = vadd.xlane.f32.xlu0 %v121
    %v147 = vpop.xlane.xlu0 %146
    %148 = vadd.xlane.f32.xlu0 %v122
    %v149 = vpop.xlane.xlu0 %148
    %150 = vadd.xlane.f32.xlu0 %v123
    %v151 = vpop.xlane.xlu0 %150
    %152 = vadd.xlane.f32.xlu0 %v124
    %v153 = vpop.xlane.xlu0 %152
    %154 = vadd.xlane.f32.xlu0 %v125
    %v155 = vpop.xlane.xlu0 %154
    %156 = vadd.xlane.f32.xlu0 %v126
    %v157 = vpop.xlane.xlu0 %156
    %158 = vadd.xlane.f32.xlu0 %v127
    %v159 = vpop.xlane.xlu0 %158
    %v160 = vmul.f32 %v129, %v79
    %v161 = vmul.f32 %v131, %v79
    %v162 = vmul.f32 %v133, %v79
    %v163 = vmul.f32 %v135, %v79
    %v164 = vmul.f32 %v137, %v79
    %v165 = vmul.f32 %v139, %v79
    %v166 = vmul.f32 %v141, %v79
    %v167 = vmul.f32 %v143, %v79
    %v168 = vmul.f32 %v145, %v79
    %v169 = vmul.f32 %v147, %v79
    %v170 = vmul.f32 %v149, %v79
    %v171 = vmul.f32 %v151, %v79
    %v172 = vmul.f32 %v153, %v79
    %v173 = vmul.f32 %v155, %v79
    %v174 = vmul.f32 %v157, %v79
    %v175 = vmul.f32 %v159, %v79
    %v176 = vadd.f32 %v160, 1e-05
    %v177 = vadd.f32 %v161, 1e-05
    %v178 = vadd.f32 %v162, 1e-05
    %v179 = vadd.f32 %v163, 1e-05
    %v180 = vadd.f32 %v164, 1e-05
    %v181 = vadd.f32 %v165, 1e-05
    %v182 = vadd.f32 %v166, 1e-05
    %v183 = vadd.f32 %v167, 1e-05
    %v184 = vadd.f32 %v168, 1e-05
    %v185 = vadd.f32 %v169, 1e-05
    %v186 = vadd.f32 %v170, 1e-05
    %v187 = vadd.f32 %v171, 1e-05
    %v188 = vadd.f32 %v172, 1e-05
    %v189 = vadd.f32 %v173, 1e-05
    %v190 = vadd.f32 %v174, 1e-05
    %v191 = vadd.f32 %v175, 1e-05
    %v192 = vrsqrt.pop %v176
    %v193 = vrsqrt.pop %v177
    %v194 = vrsqrt.pop %v178
    %v195 = vrsqrt.pop %v179
    %v196 = vrsqrt.pop %v180
    %v197 = vrsqrt.pop %v181
    %v198 = vrsqrt.pop %v182
    %v199 = vrsqrt.pop %v183
    %v200 = vrsqrt.pop %v184
    %v201 = vrsqrt.pop %v185
    %v202 = vrsqrt.pop %v186
    %v203 = vrsqrt.pop %v187
    %v204 = vrsqrt.pop %v188
    %v205 = vrsqrt.pop %v189
    %v206 = vrsqrt.pop %v190
    %v207 = vrsqrt.pop %v191
    %v208 = vmul.f32 %v96, %v192
    %v209 = vmul.f32 %v97, %v193
    %v210 = vmul.f32 %v98, %v194
    %v211 = vmul.f32 %v99, %v195
    %v212 = vmul.f32 %v100, %v196
    %v213 = vmul.f32 %v101, %v197
    %v214 = vmul.f32 %v102, %v198
    %v215 = vmul.f32 %v103, %v199
    %v216 = vmul.f32 %v104, %v200
    %v217 = vmul.f32 %v105, %v201
    %v218 = vmul.f32 %v106, %v202
    %v219 = vmul.f32 %v107, %v203
    %v220 = vmul.f32 %v108, %v204
    %v221 = vmul.f32 %v109, %v205
    %v222 = vmul.f32 %v110, %v206
    %v223 = vmul.f32 %v111, %v207
    %v225 = vlaneseq
    %v226 = vshrl.u32 %v225, 7
    %v227 = vsub.s32 0, %v226
    %v228 = vrot.slane %v45, %v227
    %v230 = vmul.f32 %v208, %v228
    %v231 = vmul.f32 %v209, %v228
    %v232 = vmul.f32 %v210, %v228
    %v233 = vmul.f32 %v211, %v228
    %v234 = vmul.f32 %v212, %v228
    %v235 = vmul.f32 %v213, %v228
    %v236 = vmul.f32 %v214, %v228
    %v237 = vmul.f32 %v215, %v228
    %v238 = vmul.f32 %v216, %v228
    %v239 = vmul.f32 %v217, %v228
    %v240 = vmul.f32 %v218, %v228
    %v241 = vmul.f32 %v219, %v228
    %v242 = vmul.f32 %v220, %v228
    %v243 = vmul.f32 %v221, %v228
    %v244 = vmul.f32 %v222, %v228
    %v245 = vmul.f32 %v223, %v228
    %v247 = vlaneseq
    %v248 = vshrl.u32 %v247, 7
    %v249 = vsub.s32 0, %v248
    %v250 = vrot.slane %v46, %v249
    %v252 = vadd.f32 %v230, %v250
    %v253 = vadd.f32 %v231, %v250
    %v254 = vadd.f32 %v232, %v250
    %v255 = vadd.f32 %v233, %v250
    %v256 = vadd.f32 %v234, %v250
    %v257 = vadd.f32 %v235, %v250
    %v258 = vadd.f32 %v236, %v250
    %v259 = vadd.f32 %v237, %v250
    %v260 = vadd.f32 %v238, %v250
    %v261 = vadd.f32 %v239, %v250
    %v262 = vadd.f32 %v240, %v250
    %v263 = vadd.f32 %v241, %v250
    %v264 = vadd.f32 %v242, %v250
    %v265 = vadd.f32 %v243, %v250
    %v266 = vadd.f32 %v244, %v250
    %v267 = vadd.f32 %v245, %v250
    %v268 = vpack.c.bf16 %v253, %v252
    %v269 = vpack.c.bf16 %v255, %v254
    %v270 = vpack.c.bf16 %v257, %v256
    %v271 = vpack.c.bf16 %v259, %v258
    %v272 = vpack.c.bf16 %v261, %v260
    %v273 = vpack.c.bf16 %v263, %v262
    %v274 = vpack.c.bf16 %v265, %v264
    %v275 = vpack.c.bf16 %v267, %v266
    %v284 = vunpack.c.l.b16 %v268
    %v285 = vunpack.c.h.b16 %v268
    %v286 = vunpack.c.l.b16 %v269
    %v287 = vunpack.c.h.b16 %v269
    %v288 = vunpack.c.l.b16 %v270
    %v289 = vunpack.c.h.b16 %v270
    %v290 = vunpack.c.l.b16 %v271
    %v291 = vunpack.c.h.b16 %v271
    %v292 = vunpack.c.l.b16 %v272
    %v293 = vunpack.c.h.b16 %v272
    %v294 = vunpack.c.l.b16 %v273
    %v295 = vunpack.c.h.b16 %v273
    %v296 = vunpack.c.l.b16 %v274
    %v297 = vunpack.c.h.b16 %v274
    %v298 = vunpack.c.l.b16 %v275
    %v299 = vunpack.c.h.b16 %v275
    %v300 = vpack.c.b16 %v284, %v284
    %v301 = vpack.c.b16 %v285, %v285
    %v302 = vpack.c.b16 %v286, %v286
    %v303 = vpack.c.b16 %v287, %v287
    %v304 = vpack.c.b16 %v288, %v288
    %v305 = vpack.c.b16 %v289, %v289
    %v306 = vpack.c.b16 %v290, %v290
    %v307 = vpack.c.b16 %v291, %v291
    %v308 = vpack.c.b16 %v292, %v292
    %v309 = vpack.c.b16 %v293, %v293
    %v310 = vpack.c.b16 %v294, %v294
    %v311 = vpack.c.b16 %v295, %v295
    %v312 = vpack.c.b16 %v296, %v296
    %v313 = vpack.c.b16 %v297, %v297
    %v314 = vpack.c.b16 %v298, %v298
    %v315 = vpack.c.b16 %v299, %v299
    %332 = vst [vmem:[#allocation5] sm:$0xf] %v300
    %333 = vst [vmem:[#allocation5 + $0x4] sm:$0xf] %v301
    %334 = vst [vmem:[#allocation5 + $0x8] sm:$0xf] %v302
    %335 = vst [vmem:[#allocation5 + $0xc] sm:$0xf] %v303
    %336 = vst [vmem:[#allocation5 + $0x10] sm:$0xf] %v304
    %337 = vst [vmem:[#allocation5 + $0x14] sm:$0xf] %v305
    %338 = vst [vmem:[#allocation5 + $0x18] sm:$0xf] %v306
    %339 = vst [vmem:[#allocation5 + $0x1c] sm:$0xf] %v307
    %340 = vst [vmem:[#allocation5 + $0x20] sm:$0xf] %v308
    %341 = vst [vmem:[#allocation5 + $0x24] sm:$0xf] %v309
    %342 = vst [vmem:[#allocation5 + $0x28] sm:$0xf] %v310
    %343 = vst [vmem:[#allocation5 + $0x2c] sm:$0xf] %v311
    %344 = vst [vmem:[#allocation5 + $0x30] sm:$0xf] %v312
    %345 = vst [vmem:[#allocation5 + $0x34] sm:$0xf] %v313
    %346 = vst [vmem:[#allocation5 + $0x38] sm:$0xf] %v314
    %347 = vst [vmem:[#allocation5 + $0x3c] sm:$0xf] %v315
    // Predicated region
    $region18: #{tpu_custom_call.1} parent=1 // pred_check
      _
    $region19: #{tpu_custom_call.1} parent=1 // pred_check_branch
      %349 = sbr.rel (0) target = $region21
    $region20: #{tpu_custom_call.1} parent=1 // pred_region
      %s351 = ssub.s32 1024, 1024
      %352 = vsyncadd [#allocation4], %s351
      %s353 = sshll.u32 [#allocation5], 4
      %s354 = int_to_ptr.vmem [resolvable:$true] %s353
      %359 = dma.vmem_to_hbm [thread:$0]  %s354, 1024, %s3, [#allocation4], 64, 64, 4
    $region21: #{tpu_custom_call.1} parent=1 // pred_fallthru
      _
    // Predicated region
    $region22: #{tpu_custom_call.1} parent=1 // pred_check
      _
    $region23: #{tpu_custom_call.1} parent=1 // pred_check_branch
      %361 = sbr.rel (0) target = $region25
    $region24: #{tpu_custom_call.1} parent=1 // pred_region
      %362 = dma.done [#allocation4], 1024
    $region25: #{tpu_custom_call.1} parent=1 // pred_fallthru
      _
    %363 = vsyncpa [#allocation3], 1
    %364 = vsyncpa [#allocation4], 1

</llo_original>
